<compile_context>
chip_gen: v6e
topology: v6e:2x2x1
jax: 0.10.0
libtpu: 0.0.40
codegen_flags: <defaults>
</compile_context>

<pallas_src>
import functools

import jax
import jax.numpy as jnp
from jax.experimental import pallas as pl
from jax.experimental.pallas import tpu as pltpu

HIDDEN_SIZE = 500   # matches nn.Linear(input_size, 500) in the torch module
_LANE = 128
_SUBLANE = 8


def _round_up(x, m):
    return (x + m - 1) // m * m


def _mlp_kernel(x_ref, w1_ref, b1_ref, w2_ref, b2_ref, o_ref):
    # In-kernel cast of the x tile to the weight dtype (no wrapper-side cast ->
    # x is read from HBM exactly once, as f32, and cast on the VPU under the
    # pipeline).  f32 accumulation on the MXU for both matmuls.
    x = x_ref[...].astype(w1_ref.dtype)
    h = jnp.dot(x, w1_ref[...], preferred_element_type=jnp.float32)
    h = h + b1_ref[...]
    # sigmoid(h) = 0.5 * tanh(0.5 * h) + 0.5  -> a single EUP transcendental
    # per element (vs exp + reciprocal), plus two cheap VALU ops.
    s = 0.5 * jnp.tanh(0.5 * h) + 0.5
    # fc2: [tb, Hp] @ [Hp, Cp]; cast activations to the weight dtype so the
    # bf16 path also runs the second matmul in bf16 with f32 accumulation.
    out = jnp.dot(s.astype(w2_ref.dtype), w2_ref[...],
                  preferred_element_type=jnp.float32)
    out = out + b2_ref[...]
    o_ref[...] = out.astype(o_ref.dtype)


def prepare_params(w1, b1, w2, b2, *, use_bf16=False):
    """Zero-pad in_dim, hidden (500->512) and num_classes (10->128) to
    lane-dense (128-multiple) sizes.

    Exactness: padded W1 rows are zero (extra x columns contribute nothing);
    padded hidden columns give h = 0 -> sigmoid = 0.5, but the matching
    zero-padded rows of W2 kill that contribution; padded output columns are
    identically 0 (b2_pad = 0) and are sliced away in the wrapper.  Keep the
    b1-is-zero-padded invariant if this function is edited.
    """
    in_dim, hidden = w1.shape
    num_classes = w2.shape[1]
    ip = _round_up(in_dim, _LANE)
    hp = _round_up(hidden, _LANE)
    cp = _round_up(num_classes, _LANE)

    w1p = jnp.pad(w1, ((0, ip - in_dim), (0, hp - hidden)))
    b1p = jnp.pad(jnp.reshape(b1, (1, hidden)), ((0, 0), (0, hp - hidden)))
    w2p = jnp.pad(w2, ((0, hp - hidden), (0, cp - num_classes)))
    b2p = jnp.pad(jnp.reshape(b2, (1, num_classes)), ((0, 0), (0, cp - num_classes)))

    if use_bf16:
        # bf16 storage for the matmul operands (recommended on v5e where the
        # MXU is bf16-only); biases, accumulation and the sigmoid stay f32.
        w1p = w1p.astype(jnp.bfloat16)
        w2p = w2p.astype(jnp.bfloat16)
    return w1p, b1p.astype(jnp.float32), w2p, b2p.astype(jnp.float32)


def _is_dual_tensorcore():
    """Best-effort generation sniff: only v7x has 2 TensorCores per chip."""
    try:
        kind = jax.devices()[0].device_kind.lower()
        return ("v7" in kind) or ("7x" in kind)
    except Exception:  # pragma: no cover - be conservative
        return False


def _choose_block_b(B, requested, dual_tc):
    """Batch tile:
      * single-TC chips (v5e/v6e): one full tile unless B exceeds `requested`
        (splitting is a serial loop there -- pure overhead + MXU underfill);
      * dual-TC v7x: split only when B >= 512 so each core still gets a full
        >= 256-row MXU tile.
    """
    b_pad = _round_up(B, _SUBLANE)
    bb = min(requested, b_pad)
    if dual_tc and B >= 512 and bb >= b_pad:
        # A single grid step would leave the second TensorCore idle.
        bb = max(256, _round_up(pl.cdiv(b_pad, 2), _SUBLANE))
    return max(_SUBLANE, bb)


@functools.partial(jax.jit, static_argnames=("num_classes", "block_b"))
def nnh1_sigm_forward(x, w1p, b1p, w2p, b2p, *, num_classes, block_b=512):
    """x: [B, input_size] f32 -> [B, num_classes] f32 (fc1 -> sigmoid -> fc2)."""
    B, in_dim = x.shape
    ip = w1p.shape[0]
    hp = w1p.shape[1]
    cp = w2p.shape[1]

    if in_dim != ip:
        # Lane-pad x to match the zero-padded W1 rows (values irrelevant, zeros
        # for safety).  For repeated calls this is best done once upstream.
        x = jnp.pad(x, ((0, 0), (0, ip - in_dim)))

    bb = _choose_block_b(B, block_b, _is_dual_tensorcore())
    grid = (pl.cdiv(B, bb),)

    # Advisory cost estimate for XLA's scheduler.
    flops = 2 * B * (ip * hp + hp * cp)
    transcendentals = B * hp  # one tanh per hidden activation
    bytes_accessed = (
        x.size * x.dtype.itemsize
        + w1p.size * w1p.dtype.itemsize
        + b1p.size * b1p.dtype.itemsize
        + w2p.size * w2p.dtype.itemsize
        + b2p.size * b2p.dtype.itemsize
        + B * cp * 4
    )
    cost = pl.CostEstimate(flops=flops, transcendentals=transcendentals,
                           bytes_accessed=bytes_accessed)

    out_padded = pl.pallas_call(
        _mlp_kernel,
        out_shape=jax.ShapeDtypeStruct((B, cp), jnp.float32),
        grid_spec=pltpu.PrefetchScalarGridSpec(
            num_scalar_prefetch=0,
            grid=grid,
            in_specs=[
                pl.BlockSpec((bb, ip), lambda i: (i, 0)),      # x tile (lane-dense K)
                # Constant index_map -> weights/biases resident across grid
                # steps.  At these sizes their double-buffered footprint is
                # tiny; add pipeline_mode=pl.Buffered(1) + vmem_limit_bytes
                # before scaling in_dim / block_b on v7x (64 MiB VMEM).
                pl.BlockSpec((ip, hp), lambda i: (0, 0)),      # W1
                pl.BlockSpec((1, hp), lambda i: (0, 0)),       # b1
                pl.BlockSpec((hp, cp), lambda i: (0, 0)),      # W2
                pl.BlockSpec((1, cp), lambda i: (0, 0)),       # b2
            ],
            out_specs=pl.BlockSpec((bb, cp), lambda i: (i, 0)),  # lane-dense (Cp=128k)
        ),
        compiler_params=pltpu.CompilerParams(
            dimension_semantics=("parallel",),
        ),
        cost_estimate=cost,
    )(x, w1p, b1p, w2p, b2p)

    # Slice away the zero-padded output columns.
    return out_padded[:, :num_classes]


def init_params(key, input_size, num_classes, hidden_size=HIDDEN_SIZE):
    """Deterministic synthetic parameters (PyTorch-Linear-like uniform init).
    Stored as [in, out] (transpose of torch's [out, in]) — see layout comment."""
    k1, k2, k3, k4 = jax.random.split(key, 4)
    bound1 = 1.0 / (input_size ** 0.5)
    bound2 = 1.0 / (hidden_size ** 0.5)
    w1 = jax.random.uniform(k1, (input_size, hidden_size), jnp.float32, -bound1, bound1)
    b1 = jax.random.uniform(k2, (1, hidden_size), jnp.float32, -bound1, bound1)
    w2 = jax.random.uniform(k3, (hidden_size, num_classes), jnp.float32, -bound2, bound2)
    b2 = jax.random.uniform(k4, (1, num_classes), jnp.float32, -bound2, bound2)
    return w1, b1, w2, b2


if __name__ == "__main__":
    key = jax.random.PRNGKey(0)
    kx, kp = jax.random.split(key)

    batch = 64
    input_size = 256
    num_classes = 10

    x = jax.random.normal(kx, (batch, input_size), jnp.float32)
    w1, b1, w2, b2 = init_params(kp, input_size, num_classes)

    # Plain-JAX reference (same semantics as the torch module: fc1 -> sigmoid -> fc2).
    ref = jax.nn.sigmoid(x @ w1 + b1) @ w2 + b2

    # f32-storage path.
    p32 = prepare_params(w1, b1, w2, b2, use_bf16=False)
    out = nnh1_sigm_forward(x, *p32, num_classes=num_classes)
    out = jax.block_until_ready(out)
    assert out.shape == (batch, num_classes)
    assert jnp.allclose(out, ref, atol=2e-3, rtol=2e-3), \
        float(jnp.max(jnp.abs(out - ref)))

    # bf16-matmul path (f32 accumulation on the MXU) — faster; looser tolerance.
    pbf = prepare_params(w1, b1, w2, b2, use_bf16=True)
    out_bf = nnh1_sigm_forward(x, *pbf, num_classes=num_classes)
    out_bf = jax.block_until_ready(out_bf)
    assert out_bf.shape == (batch, num_classes)
    assert jnp.allclose(out_bf, ref, atol=2e-2, rtol=2e-2), \
        float(jnp.max(jnp.abs(out_bf - ref)))

    print("KERNEL_OK")
</pallas_src>

<mosaic_0001>
module attributes {stable_mosaic.version = 11 : i64} {
  func.func @_mlp_kernel(%arg0: i32, %arg1: memref<64x256xf32, #tpu.memory_space<vmem>>, %arg2: memref<256x512xf32, #tpu.memory_space<vmem>>, %arg3: memref<1x512xf32, #tpu.memory_space<vmem>>, %arg4: memref<512x128xf32, #tpu.memory_space<vmem>>, %arg5: memref<1x128xf32, #tpu.memory_space<vmem>>, %arg6: memref<64x128xf32, #tpu.memory_space<vmem>>) attributes {dimension_semantics = [#tpu.dimension_semantics<parallel>], iteration_bounds = array<i64: 1>, scalar_prefetch = 0 : i64, scratch_operands = 0 : i64, tpu.core_type = #tpu.core_type<tc>, window_params = [{transform_indices = @transform_0, window_bounds = array<i64: 64, 256>}, {pipeline_mode = #tpu.pipeline_mode<synchronous>, transform_indices = @transform_1, window_bounds = array<i64: 256, 512>}, {pipeline_mode = #tpu.pipeline_mode<synchronous>, transform_indices = @transform_2, window_bounds = array<i64: 1, 512>}, {pipeline_mode = #tpu.pipeline_mode<synchronous>, transform_indices = @transform_3, window_bounds = array<i64: 512, 128>}, {pipeline_mode = #tpu.pipeline_mode<synchronous>, transform_indices = @transform_4, window_bounds = array<i64: 1, 128>}, {transform_indices = @transform_5, window_bounds = array<i64: 64, 128>}]} {
    %c0 = arith.constant 0 : index
    %c0_0 = arith.constant 0 : index
    %0 = vector.load %arg1[%c0, %c0_0] : memref<64x256xf32, #tpu.memory_space<vmem>>, vector<64x256xf32>
    %c0_1 = arith.constant 0 : index
    %c0_2 = arith.constant 0 : index
    %1 = vector.load %arg2[%c0_1, %c0_2] : memref<256x512xf32, #tpu.memory_space<vmem>>, vector<256x512xf32>
    %cst = arith.constant dense<0.000000e+00> : vector<64x512xf32>
    %2 = tpu.matmul %0, %1, %cst {dimension_numbers = #tpu.dot_dimension_numbers<[1], [0], [0], [1], [0, 0, 1, 1], [], []>} : vector<64x256xf32>, vector<256x512xf32>, vector<64x512xf32> -> vector<64x512xf32>
    %c0_3 = arith.constant 0 : index
    %c0_4 = arith.constant 0 : index
    %3 = vector.load %arg3[%c0_3, %c0_4] : memref<1x512xf32, #tpu.memory_space<vmem>>, vector<1x512xf32>
    %4 = vector.broadcast %3 : vector<1x512xf32> to vector<64x512xf32>
    %5 = arith.addf %2, %4 : vector<64x512xf32>
    %cst_5 = arith.constant 5.000000e-01 : f32
    %6 = vector.broadcast %cst_5 : f32 to vector<64x512xf32>
    %7 = arith.mulf %6, %5 : vector<64x512xf32>
    %8 = math.tanh %7 : vector<64x512xf32>
    %cst_6 = arith.constant 5.000000e-01 : f32
    %9 = vector.broadcast %cst_6 : f32 to vector<64x512xf32>
    %10 = arith.mulf %9, %8 : vector<64x512xf32>
    %cst_7 = arith.constant 5.000000e-01 : f32
    %11 = vector.broadcast %cst_7 : f32 to vector<64x512xf32>
    %12 = arith.addf %10, %11 : vector<64x512xf32>
    %c0_8 = arith.constant 0 : index
    %c0_9 = arith.constant 0 : index
    %13 = vector.load %arg4[%c0_8, %c0_9] : memref<512x128xf32, #tpu.memory_space<vmem>>, vector<512x128xf32>
    %cst_10 = arith.constant dense<0.000000e+00> : vector<64x128xf32>
    %14 = tpu.matmul %12, %13, %cst_10 {dimension_numbers = #tpu.dot_dimension_numbers<[1], [0], [0], [1], [0, 0, 1, 1], [], []>} : vector<64x512xf32>, vector<512x128xf32>, vector<64x128xf32> -> vector<64x128xf32>
    %c0_11 = arith.constant 0 : index
    %c0_12 = arith.constant 0 : index
    %15 = vector.load %arg5[%c0_11, %c0_12] : memref<1x128xf32, #tpu.memory_space<vmem>>, vector<1x128xf32>
    %16 = vector.broadcast %15 : vector<1x128xf32> to vector<64x128xf32>
    %17 = arith.addf %14, %16 : vector<64x128xf32>
    %c0_13 = arith.constant 0 : index
    %c0_14 = arith.constant 0 : index
    %18 = vector.load %arg6[%c0_13, %c0_14] : memref<64x128xf32, #tpu.memory_space<vmem>>, vector<64x128xf32>
    tpu.vector_store %arg6[%c0_13, %c0_14], %17 {strides = array<i32>} : memref<64x128xf32, #tpu.memory_space<vmem>>, vector<64x128xf32>,
    return
  }
  func.func @transform_0(%arg0: i32) -> (i32, i32) {
    %c0_i32 = arith.constant 0 : i32
    %c0_i32_0 = arith.constant 0 : i32
    return %arg0, %c0_i32 : i32, i32
  }
  func.func @transform_1(%arg0: i32) -> (i32, i32) {
    %c0_i32 = arith.constant 0 : i32
    %c0_i32_0 = arith.constant 0 : i32
    %c0_i32_1 = arith.constant 0 : i32
    return %c0_i32, %c0_i32_0 : i32, i32
  }
  func.func @transform_2(%arg0: i32) -> (i32, i32) {
    %c0_i32 = arith.constant 0 : i32
    %c0_i32_0 = arith.constant 0 : i32
    %c0_i32_1 = arith.constant 0 : i32
    return %c0_i32, %c0_i32_0 : i32, i32
  }
  func.func @transform_3(%arg0: i32) -> (i32, i32) {
    %c0_i32 = arith.constant 0 : i32
    %c0_i32_0 = arith.constant 0 : i32
    %c0_i32_1 = arith.constant 0 : i32
    return %c0_i32, %c0_i32_0 : i32, i32
  }
  func.func @transform_4(%arg0: i32) -> (i32, i32) {
    %c0_i32 = arith.constant 0 : i32
    %c0_i32_0 = arith.constant 0 : i32
    %c0_i32_1 = arith.constant 0 : i32
    return %c0_i32, %c0_i32_0 : i32, i32
  }
  func.func @transform_5(%arg0: i32) -> (i32, i32) {
    %c0_i32 = arith.constant 0 : i32
    %c0_i32_0 = arith.constant 0 : i32
    return %arg0, %c0_i32 : i32, i32
  }
}

</mosaic_0001>

<llo_original>
// kernel: nnh1_sigm_forward.1
$region0: #{nnh1_sigm_forward.1}
  #allocation0 [shape = 'u32[]', space=smem, size = 0x4, offset = 0x4, fixed_abs, tag = 'smem constant byte address 0x4 - core index']
  #allocation1 [shape = 'u32[144,128]{1,0:T(1,128)}', space=vmem, size = 0x12000, scoped, tag = 'internal scratch']
  %s0 = inlined_call_operand.hbm [shape: f32[64,256], index: 0, kind: input, shape index: {}]
  %s1 = inlined_call_operand.hbm [shape: f32[256,512], index: 1, kind: input, shape index: {}]
  %s2 = inlined_call_operand.hbm [shape: f32[1,512], index: 2, kind: input, shape index: {}]
  %s3 = inlined_call_operand.hbm [shape: f32[512,128], index: 3, kind: input, shape index: {}]
  %s4 = inlined_call_operand.vmem [shape: f32[1,128], index: 4, kind: input, shape index: {}]
  %s5 = inlined_call_operand.vmem [shape: f32[64,128], index: 5, kind: output, shape index: {}]
  %s6 = sld [smem:[#allocation0]]
  $region46: #{nnh1_sigm_forward.1} parent=0
    _
  %s8 = ssub.s32 1, %s6
  %s9 = scalar_select 0, %s8, %s6
  $region1: #{nnh1_sigm_forward.1} parent=0
    #allocation2 [shape = 'u8[65536]{0}', space=vmem, size = 0x10000, scoped, tag = 'input window, operand 0, single buffered']
    #allocation3 [shape = 's32[1]{0}', space=sflag, size = 0x4, scoped, tag = 'scoped memory for nnh1_sigm_forward.1']
    #allocation4 [shape = 'u8[524288]{0}', space=vmem, size = 0x80000, scoped, tag = 'input window, operand 1, single buffered']
    #allocation5 [shape = 's32[1]{0}', space=sflag, size = 0x4, scoped, tag = 'scoped memory for nnh1_sigm_forward.1']
    #allocation6 [shape = 'u8[2048]{0}', space=vmem, size = 0x800, scoped, tag = 'input window, operand 2, single buffered']
    #allocation7 [shape = 'u8[262144]{0}', space=vmem, size = 0x40000, scoped, tag = 'input window, operand 3, single buffered']
    #allocation8 [shape = 's32[1]{0}', space=sflag, size = 0x4, scoped, tag = 'scoped memory for nnh1_sigm_forward.1']
    %10 = vsyncpa [#allocation3], 0
    %11 = vsyncpa [#allocation5], 0
    %12 = vsyncpa [#allocation8], 0
    // Predicated region
    $region2: #{nnh1_sigm_forward.1} parent=1 // pred_check
      _
    $region3: #{nnh1_sigm_forward.1} parent=1 // pred_check_branch
      %14 = sbr.rel (0) target = $region5
    $region4: #{nnh1_sigm_forward.1} parent=1 // pred_region
      %s16 = ssub.s32 2048, 2048
      %17 = vsyncadd [#allocation3], %s16
      %s18 = sshll.u32 [#allocation2], 4
      %s19 = int_to_ptr.vmem [resolvable:$true] %s18
      %24 = dma.hbm_to_vmem [thread:$0]  %s0, 2048, %s19, [#allocation3], 256, 256, 16
    $region5: #{nnh1_sigm_forward.1} parent=1 // pred_fallthru
      _
    // Predicated region
    $region6: #{nnh1_sigm_forward.1} parent=1 // pred_check
      _
    $region7: #{nnh1_sigm_forward.1} parent=1 // pred_check_branch
      %26 = sbr.rel (0) target = $region9
    $region8: #{nnh1_sigm_forward.1} parent=1 // pred_region
      %s28 = ssub.s32 16384, 16384
      %29 = vsyncadd [#allocation5], %s28
      %s30 = sshll.u32 [#allocation4], 4
      %s31 = int_to_ptr.vmem [resolvable:$true] %s30
      %36 = dma.hbm_to_vmem [thread:$0]  %s1, 16384, %s31, [#allocation5], 512, 512, 32
    $region9: #{nnh1_sigm_forward.1} parent=1 // pred_fallthru
      _
    // Predicated region
    $region10: #{nnh1_sigm_forward.1} parent=1 // pred_check
      _
    $region11: #{nnh1_sigm_forward.1} parent=1 // pred_check_branch
      %38 = sbr.rel (0) target = $region13
    $region12: #{nnh1_sigm_forward.1} parent=1 // pred_region
      %s40 = ssub.s32 64, 64
      %41 = vsyncadd [#allocation5], %s40
      %s43 = sshll.u32 [#allocation6], 4
      %s44 = int_to_ptr.vmem [resolvable:$true] %s43
      %46 = dma.hbm_to_vmem [thread:$0]  %s2, 64, %s44, [#allocation5]
    $region13: #{nnh1_sigm_forward.1} parent=1 // pred_fallthru
      _
    // Predicated region
    $region14: #{nnh1_sigm_forward.1} parent=1 // pred_check
      _
    $region15: #{nnh1_sigm_forward.1} parent=1 // pred_check_branch
      %48 = sbr.rel (0) target = $region17
    $region16: #{nnh1_sigm_forward.1} parent=1 // pred_region
      %s50 = ssub.s32 8192, 8192
      %51 = vsyncadd [#allocation8], %s50
      %s52 = sshll.u32 [#allocation7], 4
      %s53 = int_to_ptr.vmem [resolvable:$true] %s52
      %58 = dma.hbm_to_vmem [thread:$0]  %s3, 8192, %s53, [#allocation8], 128, 128, 8
    $region17: #{nnh1_sigm_forward.1} parent=1 // pred_fallthru
      _
    // Predicated region
    $region18: #{nnh1_sigm_forward.1} parent=1 // pred_check
      _
    $region19: #{nnh1_sigm_forward.1} parent=1 // pred_check_branch
      %60 = sbr.rel (0) target = $region21
    $region20: #{nnh1_sigm_forward.1} parent=1 // pred_region
      _
    $region21: #{nnh1_sigm_forward.1} parent=1 // pred_fallthru
      _
    // Predicated region
    $region22: #{nnh1_sigm_forward.1} parent=1 // pred_check
      _
    $region23: #{nnh1_sigm_forward.1} parent=1 // pred_check_branch
      %62 = sbr.rel (0) target = $region25
    $region24: #{nnh1_sigm_forward.1} parent=1 // pred_region
      %63 = dma.done [#allocation3], 2048
    $region25: #{nnh1_sigm_forward.1} parent=1 // pred_fallthru
      _
    // Predicated region
    $region26: #{nnh1_sigm_forward.1} parent=1 // pred_check
      _
    $region27: #{nnh1_sigm_forward.1} parent=1 // pred_check_branch
      %65 = sbr.rel (0) target = $region29
    $region28: #{nnh1_sigm_forward.1} parent=1 // pred_region
      %66 = dma.done [#allocation5], 16384
    $region29: #{nnh1_sigm_forward.1} parent=1 // pred_fallthru
      _
    // Predicated region
    $region30: #{nnh1_sigm_forward.1} parent=1 // pred_check
      _
    $region31: #{nnh1_sigm_forward.1} parent=1 // pred_check_branch
      %68 = sbr.rel (0) target = $region33
    $region32: #{nnh1_sigm_forward.1} parent=1 // pred_region
      %69 = dma.done [#allocation5], 64
    $region33: #{nnh1_sigm_forward.1} parent=1 // pred_fallthru
      _
    // Predicated region
    $region34: #{nnh1_sigm_forward.1} parent=1 // pred_check
      _
    $region35: #{nnh1_sigm_forward.1} parent=1 // pred_check_branch
      %71 = sbr.rel (0) target = $region37
    $region36: #{nnh1_sigm_forward.1} parent=1 // pred_region
      %72 = dma.done [#allocation8], 8192
    $region37: #{nnh1_sigm_forward.1} parent=1 // pred_fallthru
      _
    %v73 = vld [vmem:[#allocation2] sm:$0xff]
    %v74 = vld [vmem:[#allocation2 + $0x8] sm:$0xff]
    %v75 = vld [vmem:[#allocation2 + $0x10] sm:$0xff]
    %v76 = vld [vmem:[#allocation2 + $0x18] sm:$0xff]
    %v77 = vld [vmem:[#allocation2 + $0x20] sm:$0xff]
    %v78 = vld [vmem:[#allocation2 + $0x28] sm:$0xff]
    %v79 = vld [vmem:[#allocation2 + $0x30] sm:$0xff]
    %v80 = vld [vmem:[#allocation2 + $0x38] sm:$0xff]
    %v81 = vld [vmem:[#allocation2 + $0x40] sm:$0xff]
    %v82 = vld [vmem:[#allocation2 + $0x48] sm:$0xff]
    %v83 = vld [vmem:[#allocation2 + $0x50] sm:$0xff]
    %v84 = vld [vmem:[#allocation2 + $0x58] sm:$0xff]
    %v85 = vld [vmem:[#allocation2 + $0x60] sm:$0xff]
    %v86 = vld [vmem:[#allocation2 + $0x68] sm:$0xff]
    %v87 = vld [vmem:[#allocation2 + $0x70] sm:$0xff]
    %v88 = vld [vmem:[#allocation2 + $0x78] sm:$0xff]
    %v89 = vld [vmem:[#allocation4] sm:$0xff]
    %v90 = vld [vmem:[#allocation4 + $0x8] sm:$0xff]
    %v91 = vld [vmem:[#allocation4 + $0x10] sm:$0xff]
    %v92 = vld [vmem:[#allocation4 + $0x18] sm:$0xff]
    %v93 = vld [vmem:[#allocation4 + $0x20] sm:$0xff]
    %v94 = vld [vmem:[#allocation4 + $0x28] sm:$0xff]
    %v95 = vld [vmem:[#allocation4 + $0x30] sm:$0xff]
    %v96 = vld [vmem:[#allocation4 + $0x38] sm:$0xff]
    %v97 = vld [vmem:[#allocation4 + $0x40] sm:$0xff]
    %v98 = vld [vmem:[#allocation4 + $0x48] sm:$0xff]
    %v99 = vld [vmem:[#allocation4 + $0x50] sm:$0xff]
    %v100 = vld [vmem:[#allocation4 + $0x58] sm:$0xff]
    %v101 = vld [vmem:[#allocation4 + $0x60] sm:$0xff]
    %v102 = vld [vmem:[#allocation4 + $0x68] sm:$0xff]
    %v103 = vld [vmem:[#allocation4 + $0x70] sm:$0xff]
    %v104 = vld [vmem:[#allocation4 + $0x78] sm:$0xff]
    %v105 = vld [vmem:[#allocation4 + $0x80] sm:$0xff]
    %v106 = vld [vmem:[#allocation4 + $0x88] sm:$0xff]
    %v107 = vld [vmem:[#allocation4 + $0x90] sm:$0xff]
    %v108 = vld [vmem:[#allocation4 + $0x98] sm:$0xff]
    %v109 = vld [vmem:[#allocation4 + $0xa0] sm:$0xff]
    %v110 = vld [vmem:[#allocation4 + $0xa8] sm:$0xff]
    %v111 = vld [vmem:[#allocation4 + $0xb0] sm:$0xff]
    %v112 = vld [vmem:[#allocation4 + $0xb8] sm:$0xff]
    %v113 = vld [vmem:[#allocation4 + $0xc0] sm:$0xff]
    %v114 = vld [vmem:[#allocation4 + $0xc8] sm:$0xff]
    %v115 = vld [vmem:[#allocation4 + $0xd0] sm:$0xff]
    %v116 = vld [vmem:[#allocation4 + $0xd8] sm:$0xff]
    %v117 = vld [vmem:[#allocation4 + $0xe0] sm:$0xff]
    %v118 = vld [vmem:[#allocation4 + $0xe8] sm:$0xff]
    %v119 = vld [vmem:[#allocation4 + $0xf0] sm:$0xff]
    %v120 = vld [vmem:[#allocation4 + $0xf8] sm:$0xff]
    %v121 = vld [vmem:[#allocation4 + $0x100] sm:$0xff]
    %v122 = vld [vmem:[#allocation4 + $0x108] sm:$0xff]
    %v123 = vld [vmem:[#allocation4 + $0x110] sm:$0xff]
    %v124 = vld [vmem:[#allocation4 + $0x118] sm:$0xff]
    %v125 = vld [vmem:[#allocation4 + $0x120] sm:$0xff]
    %v126 = vld [vmem:[#allocation4 + $0x128] sm:$0xff]
    %v127 = vld [vmem:[#allocation4 + $0x130] sm:$0xff]
    %v128 = vld [vmem:[#allocation4 + $0x138] sm:$0xff]
    %v129 = vld [vmem:[#allocation4 + $0x140] sm:$0xff]
    %v130 = vld [vmem:[#allocation4 + $0x148] sm:$0xff]
    %v131 = vld [vmem:[#allocation4 + $0x150] sm:$0xff]
    %v132 = vld [vmem:[#allocation4 + $0x158] sm:$0xff]
    %v133 = vld [vmem:[#allocation4 + $0x160] sm:$0xff]
    %v134 = vld [vmem:[#allocation4 + $0x168] sm:$0xff]
    %v135 = vld [vmem:[#allocation4 + $0x170] sm:$0xff]
    %v136 = vld [vmem:[#allocation4 + $0x178] sm:$0xff]
    %v137 = vld [vmem:[#allocation4 + $0x180] sm:$0xff]
    %v138 = vld [vmem:[#allocation4 + $0x188] sm:$0xff]
    %v139 = vld [vmem:[#allocation4 + $0x190] sm:$0xff]
    %v140 = vld [vmem:[#allocation4 + $0x198] sm:$0xff]
    %v141 = vld [vmem:[#allocation4 + $0x1a0] sm:$0xff]
    %v142 = vld [vmem:[#allocation4 + $0x1a8] sm:$0xff]
    %v143 = vld [vmem:[#allocation4 + $0x1b0] sm:$0xff]
    %v144 = vld [vmem:[#allocation4 + $0x1b8] sm:$0xff]
    %v145 = vld [vmem:[#allocation4 + $0x1c0] sm:$0xff]
    %v146 = vld [vmem:[#allocation4 + $0x1c8] sm:$0xff]
    %v147 = vld [vmem:[#allocation4 + $0x1d0] sm:$0xff]
    %v148 = vld [vmem:[#allocation4 + $0x1d8] sm:$0xff]
    %v149 = vld [vmem:[#allocation4 + $0x1e0] sm:$0xff]
    %v150 = vld [vmem:[#allocation4 + $0x1e8] sm:$0xff]
    %v151 = vld [vmem:[#allocation4 + $0x1f0] sm:$0xff]
    %v152 = vld [vmem:[#allocation4 + $0x1f8] sm:$0xff]
    %v153 = vld [vmem:[#allocation4 + $0x200] sm:$0xff]
    %v154 = vld [vmem:[#allocation4 + $0x208] sm:$0xff]
    %v155 = vld [vmem:[#allocation4 + $0x210] sm:$0xff]
    %v156 = vld [vmem:[#allocation4 + $0x218] sm:$0xff]
    %v157 = vld [vmem:[#allocation4 + $0x220] sm:$0xff]
    %v158 = vld [vmem:[#allocation4 + $0x228] sm:$0xff]
    %v159 = vld [vmem:[#allocation4 + $0x230] sm:$0xff]
    %v160 = vld [vmem:[#allocation4 + $0x238] sm:$0xff]
    %v161 = vld [vmem:[#allocation4 + $0x240] sm:$0xff]
    %v162 = vld [vmem:[#allocation4 + $0x248] sm:$0xff]
    %v163 = vld [vmem:[#allocation4 + $0x250] sm:$0xff]
    %v164 = vld [vmem:[#allocation4 + $0x258] sm:$0xff]
    %v165 = vld [vmem:[#allocation4 + $0x260] sm:$0xff]
    %v166 = vld [vmem:[#allocation4 + $0x268] sm:$0xff]
    %v167 = vld [vmem:[#allocation4 + $0x270] sm:$0xff]
    %v168 = vld [vmem:[#allocation4 + $0x278] sm:$0xff]
    %v169 = vld [vmem:[#allocation4 + $0x280] sm:$0xff]
    %v170 = vld [vmem:[#allocation4 + $0x288] sm:$0xff]
    %v171 = vld [vmem:[#allocation4 + $0x290] sm:$0xff]
    %v172 = vld [vmem:[#allocation4 + $0x298] sm:$0xff]
    %v173 = vld [vmem:[#allocation4 + $0x2a0] sm:$0xff]
    %v174 = vld [vmem:[#allocation4 + $0x2a8] sm:$0xff]
    %v175 = vld [vmem:[#allocation4 + $0x2b0] sm:$0xff]
    %v176 = vld [vmem:[#allocation4 + $0x2b8] sm:$0xff]
    %v177 = vld [vmem:[#allocation4 + $0x2c0] sm:$0xff]
    %v178 = vld [vmem:[#allocation4 + $0x2c8] sm:$0xff]
    %v179 = vld [vmem:[#allocation4 + $0x2d0] sm:$0xff]
    %v180 = vld [vmem:[#allocation4 + $0x2d8] sm:$0xff]
    %v181 = vld [vmem:[#allocation4 + $0x2e0] sm:$0xff]
    %v182 = vld [vmem:[#allocation4 + $0x2e8] sm:$0xff]
    %v183 = vld [vmem:[#allocation4 + $0x2f0] sm:$0xff]
    %v184 = vld [vmem:[#allocation4 + $0x2f8] sm:$0xff]
    %v185 = vld [vmem:[#allocation4 + $0x300] sm:$0xff]
    %v186 = vld [vmem:[#allocation4 + $0x308] sm:$0xff]
    %v187 = vld [vmem:[#allocation4 + $0x310] sm:$0xff]
    %v188 = vld [vmem:[#allocation4 + $0x318] sm:$0xff]
    %v189 = vld [vmem:[#allocation4 + $0x320] sm:$0xff]
    %v190 = vld [vmem:[#allocation4 + $0x328] sm:$0xff]
    %v191 = vld [vmem:[#allocation4 + $0x330] sm:$0xff]
    %v192 = vld [vmem:[#allocation4 + $0x338] sm:$0xff]
    %v193 = vld [vmem:[#allocation4 + $0x340] sm:$0xff]
    %v194 = vld [vmem:[#allocation4 + $0x348] sm:$0xff]
    %v195 = vld [vmem:[#allocation4 + $0x350] sm:$0xff]
    %v196 = vld [vmem:[#allocation4 + $0x358] sm:$0xff]
    %v197 = vld [vmem:[#allocation4 + $0x360] sm:$0xff]
    %v198 = vld [vmem:[#allocation4 + $0x368] sm:$0xff]
    %v199 = vld [vmem:[#allocation4 + $0x370] sm:$0xff]
    %v200 = vld [vmem:[#allocation4 + $0x378] sm:$0xff]
    %v201 = vld [vmem:[#allocation4 + $0x380] sm:$0xff]
    %v202 = vld [vmem:[#allocation4 + $0x388] sm:$0xff]
    %v203 = vld [vmem:[#allocation4 + $0x390] sm:$0xff]
    %v204 = vld [vmem:[#allocation4 + $0x398] sm:$0xff]
    %v205 = vld [vmem:[#allocation4 + $0x3a0] sm:$0xff]
    %v206 = vld [vmem:[#allocation4 + $0x3a8] sm:$0xff]
    %v207 = vld [vmem:[#allocation4 + $0x3b0] sm:$0xff]
    %v208 = vld [vmem:[#allocation4 + $0x3b8] sm:$0xff]
    %v209 = vld [vmem:[#allocation4 + $0x3c0] sm:$0xff]
    %v210 = vld [vmem:[#allocation4 + $0x3c8] sm:$0xff]
    %v211 = vld [vmem:[#allocation4 + $0x3d0] sm:$0xff]
    %v212 = vld [vmem:[#allocation4 + $0x3d8] sm:$0xff]
    %v213 = vld [vmem:[#allocation4 + $0x3e0] sm:$0xff]
    %v214 = vld [vmem:[#allocation4 + $0x3e8] sm:$0xff]
    %v215 = vld [vmem:[#allocation4 + $0x3f0] sm:$0xff]
    %v216 = vld [vmem:[#allocation4 + $0x3f8] sm:$0xff]
    %v217 = vld [vmem:[#allocation6] sm:$0xf]
    %v219 = vlaneseq
    %v220 = vshrl.u32 %v219, 7
    %v221 = vsub.s32 0, %v220
    %v222 = vrot.slane %v217, %v221
    %v223 = vlaneseq
    %v224 = vshrl.u32 %v223, 7
    %v225 = vsub.s32 1, %v224
    %v226 = vrot.slane %v217, %v225
    %v227 = vlaneseq
    %v228 = vshrl.u32 %v227, 7
    %v229 = vsub.s32 2, %v228
    %v230 = vrot.slane %v217, %v229
    %v231 = vlaneseq
    %v232 = vshrl.u32 %v231, 7
    %v233 = vsub.s32 3, %v232
    %v234 = vrot.slane %v217, %v233
    %239 = vmatprep.subr.mxu0 %v150
    %240 = vmatpush1.msra.mxu0 %v149
    %241 = vmatprep.subr.mxu0 %v146
    %242 = vmatpush1.msra.mxu0 %v145
    %243 = vmatprep.subr.mxu0 %v142
    %244 = vmatpush1.msra.mxu0 %v141
    %245 = vmatprep.subr.mxu0 %v138
    %246 = vmatpush1.msra.mxu0 %v137
    %247 = vmatprep.subr.mxu0 %v134
    %248 = vmatpush1.msra.mxu0 %v133
    %249 = vmatprep.subr.mxu0 %v130
    %250 = vmatpush1.msra.mxu0 %v129
    %251 = vmatprep.subr.mxu0 %v126
    %252 = vmatpush1.msra.mxu0 %v125
    %253 = vmatprep.subr.mxu0 %v122
    %254 = vmatpush1.msra.mxu0 %v121
    %255 = vmatprep.subr.mxu0 %v118
    %256 = vmatpush1.msra.mxu0 %v117
    %257 = vmatprep.subr.mxu0 %v114
    %258 = vmatpush1.msra.mxu0 %v113
    %259 = vmatprep.subr.mxu0 %v110
    %260 = vmatpush1.msra.mxu0 %v109
    %261 = vmatprep.subr.mxu0 %v106
    %262 = vmatpush1.msra.mxu0 %v105
    %263 = vmatprep.subr.mxu0 %v102
    %264 = vmatpush1.msra.mxu0 %v101
    %265 = vmatprep.subr.mxu0 %v98
    %266 = vmatpush1.msra.mxu0 %v97
    %267 = vmatprep.subr.mxu0 %v94
    %268 = vmatpush1.msra.mxu0 %v93
    %269 = vmatprep.subr.mxu0 %v90
    %270 = vmatpush1.msra.mxu0 %v89
    %271 = vmatprep.subr.mxu0 %v214
    %272 = vmatpush2.msra.mxu0 %v213
    %273 = vmatprep.subr.mxu0 %v210
    %274 = vmatpush2.msra.mxu0 %v209
    %275 = vmatprep.subr.mxu0 %v206
    %276 = vmatpush2.msra.mxu0 %v205
    %277 = vmatprep.subr.mxu0 %v202
    %278 = vmatpush2.msra.mxu0 %v201
    %279 = vmatprep.subr.mxu0 %v198
    %280 = vmatpush2.msra.mxu0 %v197
    %281 = vmatprep.subr.mxu0 %v194
    %282 = vmatpush2.msra.mxu0 %v193
    %283 = vmatprep.subr.mxu0 %v190
    %284 = vmatpush2.msra.mxu0 %v189
    %285 = vmatprep.subr.mxu0 %v186
    %286 = vmatpush2.msra.mxu0 %v185
    %287 = vmatprep.subr.mxu0 %v182
    %288 = vmatpush2.msra.mxu0 %v181
    %289 = vmatprep.subr.mxu0 %v178
    %290 = vmatpush2.msra.mxu0 %v177
    %291 = vmatprep.subr.mxu0 %v174
    %292 = vmatpush2.msra.mxu0 %v173
    %293 = vmatprep.subr.mxu0 %v170
    %294 = vmatpush2.msra.mxu0 %v169
    %295 = vmatprep.subr.mxu0 %v166
    %296 = vmatpush2.msra.mxu0 %v165
    %297 = vmatprep.subr.mxu0 %v162
    %298 = vmatpush2.msra.mxu0 %v161
    %299 = vmatprep.subr.mxu0 %v158
    %300 = vmatpush2.msra.mxu0 %v157
    %301 = vmatprep.subr.mxu0 %v154
    %302 = vmatpush2.msra.mxu0 %v153
    %303 = vmatprep.mubr.f32.mxu0 %v74
    %304 = vmatmul.mubr.f32.gmra.mxu0 %v73
    %v305 = vpop.f32.mrf.mxu0
    %v306 = vadd.f32 %v222, %v305
    %v307 = vpop.f32.mrf.mxu0
    %v308 = vadd.f32 %v226, %v307
    %309 = vmatprep.mubr.f32.mxu0 %v76
    %310 = vmatmul.mubr.f32.gmra.mxu0 %v75
    %v311 = vpop.f32.mrf.mxu0
    %v312 = vadd.f32 %v222, %v311
    %v313 = vpop.f32.mrf.mxu0
    %v314 = vadd.f32 %v226, %v313
    %315 = vmatprep.mubr.f32.mxu0 %v78
    %316 = vmatmul.mubr.f32.gmra.mxu0 %v77
    %v317 = vpop.f32.mrf.mxu0
    %v318 = vadd.f32 %v222, %v317
    %v319 = vpop.f32.mrf.mxu0
    %v320 = vadd.f32 %v226, %v319
    %321 = vmatprep.mubr.f32.mxu0 %v80
    %322 = vmatmul.mubr.f32.gmra.mxu0 %v79
    %v323 = vpop.f32.mrf.mxu0
    %v324 = vadd.f32 %v222, %v323
    %v325 = vpop.f32.mrf.mxu0
    %v326 = vadd.f32 %v226, %v325
    %327 = vmatprep.mubr.f32.mxu0 %v82
    %328 = vmatmul.mubr.f32.gmra.mxu0 %v81
    %v329 = vpop.f32.mrf.mxu0
    %v330 = vadd.f32 %v222, %v329
    %v331 = vpop.f32.mrf.mxu0
    %v332 = vadd.f32 %v226, %v331
    %333 = vmatprep.mubr.f32.mxu0 %v84
    %334 = vmatmul.mubr.f32.gmra.mxu0 %v83
    %v335 = vpop.f32.mrf.mxu0
    %v336 = vadd.f32 %v222, %v335
    %v337 = vpop.f32.mrf.mxu0
    %v338 = vadd.f32 %v226, %v337
    %339 = vmatprep.mubr.f32.mxu0 %v86
    %340 = vmatmul.mubr.f32.gmra.mxu0 %v85
    %v341 = vpop.f32.mrf.mxu0
    %v342 = vadd.f32 %v222, %v341
    %v343 = vpop.f32.mrf.mxu0
    %v344 = vadd.f32 %v226, %v343
    %345 = vmatprep.mubr.f32.mxu0 %v88
    %346 = vmatmul.mubr.f32.gmra.mxu0 %v87
    %v347 = vpop.f32.mrf.mxu0
    %v348 = vadd.f32 %v222, %v347
    %v349 = vpop.f32.mrf.mxu0
    %v350 = vadd.f32 %v226, %v349
    %351 = vdwg.mxu0
    %352 = vmatprep.subr.mxu0 %v152
    %353 = vmatpush1.msra.mxu0 %v151
    %354 = vmatprep.subr.mxu0 %v148
    %355 = vmatpush1.msra.mxu0 %v147
    %356 = vmatprep.subr.mxu0 %v144
    %357 = vmatpush1.msra.mxu0 %v143
    %358 = vmatprep.subr.mxu0 %v140
    %359 = vmatpush1.msra.mxu0 %v139
    %360 = vmatprep.subr.mxu0 %v136
    %361 = vmatpush1.msra.mxu0 %v135
    %362 = vmatprep.subr.mxu0 %v132
    %363 = vmatpush1.msra.mxu0 %v131
    %364 = vmatprep.subr.mxu0 %v128
    %365 = vmatpush1.msra.mxu0 %v127
    %366 = vmatprep.subr.mxu0 %v124
    %367 = vmatpush1.msra.mxu0 %v123
    %368 = vmatprep.subr.mxu0 %v120
    %369 = vmatpush1.msra.mxu0 %v119
    %370 = vmatprep.subr.mxu0 %v116
    %371 = vmatpush1.msra.mxu0 %v115
    %372 = vmatprep.subr.mxu0 %v112
    %373 = vmatpush1.msra.mxu0 %v111
    %374 = vmatprep.subr.mxu0 %v108
    %375 = vmatpush1.msra.mxu0 %v107
    %376 = vmatprep.subr.mxu0 %v104
    %377 = vmatpush1.msra.mxu0 %v103
    %378 = vmatprep.subr.mxu0 %v100
    %379 = vmatpush1.msra.mxu0 %v99
    %380 = vmatprep.subr.mxu0 %v96
    %381 = vmatpush1.msra.mxu0 %v95
    %382 = vmatprep.subr.mxu0 %v92
    %383 = vmatpush1.msra.mxu0 %v91
    %384 = vmatprep.subr.mxu0 %v216
    %385 = vmatpush2.msra.mxu0 %v215
    %386 = vmatprep.subr.mxu0 %v212
    %387 = vmatpush2.msra.mxu0 %v211
    %388 = vmatprep.subr.mxu0 %v208
    %389 = vmatpush2.msra.mxu0 %v207
    %390 = vmatprep.subr.mxu0 %v204
    %391 = vmatpush2.msra.mxu0 %v203
    %392 = vmatprep.subr.mxu0 %v200
    %393 = vmatpush2.msra.mxu0 %v199
    %394 = vmatprep.subr.mxu0 %v196
    %395 = vmatpush2.msra.mxu0 %v195
    %396 = vmatprep.subr.mxu0 %v192
    %397 = vmatpush2.msra.mxu0 %v191
    %398 = vmatprep.subr.mxu0 %v188
    %399 = vmatpush2.msra.mxu0 %v187
    %400 = vmatprep.subr.mxu0 %v184
    %401 = vmatpush2.msra.mxu0 %v183
    %402 = vmatprep.subr.mxu0 %v180
    %403 = vmatpush2.msra.mxu0 %v179
    %404 = vmatprep.subr.mxu0 %v176
    %405 = vmatpush2.msra.mxu0 %v175
    %406 = vmatprep.subr.mxu0 %v172
    %407 = vmatpush2.msra.mxu0 %v171
    %408 = vmatprep.subr.mxu0 %v168
    %409 = vmatpush2.msra.mxu0 %v167
    %410 = vmatprep.subr.mxu0 %v164
    %411 = vmatpush2.msra.mxu0 %v163
    %412 = vmatprep.subr.mxu0 %v160
    %413 = vmatpush2.msra.mxu0 %v159
    %414 = vmatprep.subr.mxu0 %v156
    %415 = vmatpush2.msra.mxu0 %v155
    %416 = vmatprep.mubr.f32.mxu0 %v74
    %417 = vmatmul.mubr.f32.gmra.mxu0 %v73
    %v418 = vpop.f32.mrf.mxu0
    %v419 = vadd.f32 %v230, %v418
    %v420 = vpop.f32.mrf.mxu0
    %v421 = vadd.f32 %v234, %v420
    %422 = vmatprep.mubr.f32.mxu0 %v76
    %423 = vmatmul.mubr.f32.gmra.mxu0 %v75
    %v424 = vpop.f32.mrf.mxu0
    %v425 = vadd.f32 %v230, %v424
    %v426 = vpop.f32.mrf.mxu0
    %v427 = vadd.f32 %v234, %v426
    %428 = vmatprep.mubr.f32.mxu0 %v78
    %429 = vmatmul.mubr.f32.gmra.mxu0 %v77
    %v430 = vpop.f32.mrf.mxu0
    %v431 = vadd.f32 %v230, %v430
    %v432 = vpop.f32.mrf.mxu0
    %v433 = vadd.f32 %v234, %v432
    %434 = vmatprep.mubr.f32.mxu0 %v80
    %435 = vmatmul.mubr.f32.gmra.mxu0 %v79
    %v436 = vpop.f32.mrf.mxu0
    %v437 = vadd.f32 %v230, %v436
    %v438 = vpop.f32.mrf.mxu0
    %v439 = vadd.f32 %v234, %v438
    %440 = vmatprep.mubr.f32.mxu0 %v82
    %441 = vmatmul.mubr.f32.gmra.mxu0 %v81
    %v442 = vpop.f32.mrf.mxu0
    %v443 = vadd.f32 %v230, %v442
    %v444 = vpop.f32.mrf.mxu0
    %v445 = vadd.f32 %v234, %v444
    %446 = vmatprep.mubr.f32.mxu0 %v84
    %447 = vmatmul.mubr.f32.gmra.mxu0 %v83
    %v448 = vpop.f32.mrf.mxu0
    %v449 = vadd.f32 %v230, %v448
    %v450 = vpop.f32.mrf.mxu0
    %v451 = vadd.f32 %v234, %v450
    %452 = vmatprep.mubr.f32.mxu0 %v86
    %453 = vmatmul.mubr.f32.gmra.mxu0 %v85
    %v454 = vpop.f32.mrf.mxu0
    %v455 = vadd.f32 %v230, %v454
    %v456 = vpop.f32.mrf.mxu0
    %v457 = vadd.f32 %v234, %v456
    %458 = vmatprep.mubr.f32.mxu0 %v88
    %459 = vmatmul.mubr.f32.gmra.mxu0 %v87
    %v460 = vpop.f32.mrf.mxu0
    %v461 = vadd.f32 %v230, %v460
    %v462 = vpop.f32.mrf.mxu0
    %v463 = vadd.f32 %v234, %v462
    %464 = vdwg.mxu0
    %v465 = vmul.f32 %v306, 0.5
    %v466 = vmul.f32 %v308, 0.5
    %v467 = vmul.f32 %v419, 0.5
    %v468 = vmul.f32 %v421, 0.5
    %v469 = vmul.f32 %v312, 0.5
    %v470 = vmul.f32 %v314, 0.5
    %v471 = vmul.f32 %v425, 0.5
    %v472 = vmul.f32 %v427, 0.5
    %v473 = vmul.f32 %v318, 0.5
    %v474 = vmul.f32 %v320, 0.5
    %v475 = vmul.f32 %v431, 0.5
    %v476 = vmul.f32 %v433, 0.5
    %v477 = vmul.f32 %v324, 0.5
    %v478 = vmul.f32 %v326, 0.5
    %v479 = vmul.f32 %v437, 0.5
    %v480 = vmul.f32 %v439, 0.5
    %v481 = vmul.f32 %v330, 0.5
    %v482 = vmul.f32 %v332, 0.5
    %v483 = vmul.f32 %v443, 0.5
    %v484 = vmul.f32 %v445, 0.5
    %v485 = vmul.f32 %v336, 0.5
    %v486 = vmul.f32 %v338, 0.5
    %v487 = vmul.f32 %v449, 0.5
    %v488 = vmul.f32 %v451, 0.5
    %v489 = vmul.f32 %v342, 0.5
    %v490 = vmul.f32 %v344, 0.5
    %v491 = vmul.f32 %v455, 0.5
    %v492 = vmul.f32 %v457, 0.5
    %v493 = vmul.f32 %v348, 0.5
    %v494 = vmul.f32 %v350, 0.5
    %v495 = vmul.f32 %v461, 0.5
    %v496 = vmul.f32 %v463, 0.5
    %v497 = vtanh.pop %v465
    %v498 = vtanh.pop %v466
    %v499 = vtanh.pop %v467
    %v500 = vtanh.pop %v468
    %v501 = vtanh.pop %v469
    %v502 = vtanh.pop %v470
    %v503 = vtanh.pop %v471
    %v504 = vtanh.pop %v472
    %v505 = vtanh.pop %v473
    %v506 = vtanh.pop %v474
    %v507 = vtanh.pop %v475
    %v508 = vtanh.pop %v476
    %v509 = vtanh.pop %v477
    %v510 = vtanh.pop %v478
    %v511 = vtanh.pop %v479
    %v512 = vtanh.pop %v480
    %v513 = vtanh.pop %v481
    %v514 = vtanh.pop %v482
    %v515 = vtanh.pop %v483
    %v516 = vtanh.pop %v484
    %v517 = vtanh.pop %v485
    %v518 = vtanh.pop %v486
    %v519 = vtanh.pop %v487
    %v520 = vtanh.pop %v488
    %v521 = vtanh.pop %v489
    %v522 = vtanh.pop %v490
    %v523 = vtanh.pop %v491
    %v524 = vtanh.pop %v492
    %v525 = vtanh.pop %v493
    %v526 = vtanh.pop %v494
    %v527 = vtanh.pop %v495
    %v528 = vtanh.pop %v496
    %v529 = vmul.f32 %v497, 0.5
    %v530 = vmul.f32 %v498, 0.5
    %v531 = vmul.f32 %v499, 0.5
    %v532 = vmul.f32 %v500, 0.5
    %v533 = vmul.f32 %v501, 0.5
    %v534 = vmul.f32 %v502, 0.5
    %v535 = vmul.f32 %v503, 0.5
    %v536 = vmul.f32 %v504, 0.5
    %v537 = vmul.f32 %v505, 0.5
    %v538 = vmul.f32 %v506, 0.5
    %v539 = vmul.f32 %v507, 0.5
    %v540 = vmul.f32 %v508, 0.5
    %v541 = vmul.f32 %v509, 0.5
    %v542 = vmul.f32 %v510, 0.5
    %v543 = vmul.f32 %v511, 0.5
    %v544 = vmul.f32 %v512, 0.5
    %v545 = vmul.f32 %v513, 0.5
    %v546 = vmul.f32 %v514, 0.5
    %v547 = vmul.f32 %v515, 0.5
    %v548 = vmul.f32 %v516, 0.5
    %v549 = vmul.f32 %v517, 0.5
    %v550 = vmul.f32 %v518, 0.5
    %v551 = vmul.f32 %v519, 0.5
    %v552 = vmul.f32 %v520, 0.5
    %v553 = vmul.f32 %v521, 0.5
    %v554 = vmul.f32 %v522, 0.5
    %v555 = vmul.f32 %v523, 0.5
    %v556 = vmul.f32 %v524, 0.5
    %v557 = vmul.f32 %v525, 0.5
    %v558 = vmul.f32 %v526, 0.5
    %v559 = vmul.f32 %v527, 0.5
    %v560 = vmul.f32 %v528, 0.5
    %v561 = vadd.f32 %v529, 0.5
    %v562 = vadd.f32 %v530, 0.5
    %v563 = vadd.f32 %v531, 0.5
    %v564 = vadd.f32 %v532, 0.5
    %v565 = vadd.f32 %v533, 0.5
    %v566 = vadd.f32 %v534, 0.5
    %v567 = vadd.f32 %v535, 0.5
    %v568 = vadd.f32 %v536, 0.5
    %v569 = vadd.f32 %v537, 0.5
    %v570 = vadd.f32 %v538, 0.5
    %v571 = vadd.f32 %v539, 0.5
    %v572 = vadd.f32 %v540, 0.5
    %v573 = vadd.f32 %v541, 0.5
    %v574 = vadd.f32 %v542, 0.5
    %v575 = vadd.f32 %v543, 0.5
    %v576 = vadd.f32 %v544, 0.5
    %v577 = vadd.f32 %v545, 0.5
    %v578 = vadd.f32 %v546, 0.5
    %v579 = vadd.f32 %v547, 0.5
    %v580 = vadd.f32 %v548, 0.5
    %v581 = vadd.f32 %v549, 0.5
    %v582 = vadd.f32 %v550, 0.5
    %v583 = vadd.f32 %v551, 0.5
    %v584 = vadd.f32 %v552, 0.5
    %v585 = vadd.f32 %v553, 0.5
    %v586 = vadd.f32 %v554, 0.5
    %v587 = vadd.f32 %v555, 0.5
    %v588 = vadd.f32 %v556, 0.5
    %v589 = vadd.f32 %v557, 0.5
    %v590 = vadd.f32 %v558, 0.5
    %v591 = vadd.f32 %v559, 0.5
    %v592 = vadd.f32 %v560, 0.5
    %v593 = vld [vmem:[#allocation7] sm:$0xff]
    %v594 = vld [vmem:[#allocation7 + $0x8] sm:$0xff]
    %v595 = vld [vmem:[#allocation7 + $0x10] sm:$0xff]
    %v596 = vld [vmem:[#allocation7 + $0x18] sm:$0xff]
    %v597 = vld [vmem:[#allocation7 + $0x20] sm:$0xff]
    %v598 = vld [vmem:[#allocation7 + $0x28] sm:$0xff]
    %v599 = vld [vmem:[#allocation7 + $0x30] sm:$0xff]
    %v600 = vld [vmem:[#allocation7 + $0x38] sm:$0xff]
    %v601 = vld [vmem:[#allocation7 + $0x40] sm:$0xff]
    %v602 = vld [vmem:[#allocation7 + $0x48] sm:$0xff]
    %v603 = vld [vmem:[#allocation7 + $0x50] sm:$0xff]
    %v604 = vld [vmem:[#allocation7 + $0x58] sm:$0xff]
    %v605 = vld [vmem:[#allocation7 + $0x60] sm:$0xff]
    %v606 = vld [vmem:[#allocation7 + $0x68] sm:$0xff]
    %v607 = vld [vmem:[#allocation7 + $0x70] sm:$0xff]
    %v608 = vld [vmem:[#allocation7 + $0x78] sm:$0xff]
    %v609 = vld [vmem:[#allocation7 + $0x80] sm:$0xff]
    %v610 = vld [vmem:[#allocation7 + $0x88] sm:$0xff]
    %v611 = vld [vmem:[#allocation7 + $0x90] sm:$0xff]
    %v612 = vld [vmem:[#allocation7 + $0x98] sm:$0xff]
    %v613 = vld [vmem:[#allocation7 + $0xa0] sm:$0xff]
    %v614 = vld [vmem:[#allocation7 + $0xa8] sm:$0xff]
    %v615 = vld [vmem:[#allocation7 + $0xb0] sm:$0xff]
    %v616 = vld [vmem:[#allocation7 + $0xb8] sm:$0xff]
    %v617 = vld [vmem:[#allocation7 + $0xc0] sm:$0xff]
    %v618 = vld [vmem:[#allocation7 + $0xc8] sm:$0xff]
    %v619 = vld [vmem:[#allocation7 + $0xd0] sm:$0xff]
    %v620 = vld [vmem:[#allocation7 + $0xd8] sm:$0xff]
    %v621 = vld [vmem:[#allocation7 + $0xe0] sm:$0xff]
    %v622 = vld [vmem:[#allocation7 + $0xe8] sm:$0xff]
    %v623 = vld [vmem:[#allocation7 + $0xf0] sm:$0xff]
    %v624 = vld [vmem:[#allocation7 + $0xf8] sm:$0xff]
    %v625 = vld [vmem:[#allocation7 + $0x100] sm:$0xff]
    %v626 = vld [vmem:[#allocation7 + $0x108] sm:$0xff]
    %v627 = vld [vmem:[#allocation7 + $0x110] sm:$0xff]
    %v628 = vld [vmem:[#allocation7 + $0x118] sm:$0xff]
    %v629 = vld [vmem:[#allocation7 + $0x120] sm:$0xff]
    %v630 = vld [vmem:[#allocation7 + $0x128] sm:$0xff]
    %v631 = vld [vmem:[#allocation7 + $0x130] sm:$0xff]
    %v632 = vld [vmem:[#allocation7 + $0x138] sm:$0xff]
    %v633 = vld [vmem:[#allocation7 + $0x140] sm:$0xff]
    %v634 = vld [vmem:[#allocation7 + $0x148] sm:$0xff]
    %v635 = vld [vmem:[#allocation7 + $0x150] sm:$0xff]
    %v636 = vld [vmem:[#allocation7 + $0x158] sm:$0xff]
    %v637 = vld [vmem:[#allocation7 + $0x160] sm:$0xff]
    %v638 = vld [vmem:[#allocation7 + $0x168] sm:$0xff]
    %v639 = vld [vmem:[#allocation7 + $0x170] sm:$0xff]
    %v640 = vld [vmem:[#allocation7 + $0x178] sm:$0xff]
    %v641 = vld [vmem:[#allocation7 + $0x180] sm:$0xff]
    %v642 = vld [vmem:[#allocation7 + $0x188] sm:$0xff]
    %v643 = vld [vmem:[#allocation7 + $0x190] sm:$0xff]
    %v644 = vld [vmem:[#allocation7 + $0x198] sm:$0xff]
    %v645 = vld [vmem:[#allocation7 + $0x1a0] sm:$0xff]
    %v646 = vld [vmem:[#allocation7 + $0x1a8] sm:$0xff]
    %v647 = vld [vmem:[#allocation7 + $0x1b0] sm:$0xff]
    %v648 = vld [vmem:[#allocation7 + $0x1b8] sm:$0xff]
    %v649 = vld [vmem:[#allocation7 + $0x1c0] sm:$0xff]
    %v650 = vld [vmem:[#allocation7 + $0x1c8] sm:$0xff]
    %v651 = vld [vmem:[#allocation7 + $0x1d0] sm:$0xff]
    %v652 = vld [vmem:[#allocation7 + $0x1d8] sm:$0xff]
    %v653 = vld [vmem:[#allocation7 + $0x1e0] sm:$0xff]
    %v654 = vld [vmem:[#allocation7 + $0x1e8] sm:$0xff]
    %v655 = vld [vmem:[#allocation7 + $0x1f0] sm:$0xff]
    %v656 = vld [vmem:[#allocation7 + $0x1f8] sm:$0xff]
    %v657 = vld [vmem:[%s4] sm:$0x1]
    %v659 = vlaneseq
    %v660 = vshrl.u32 %v659, 7
    %v661 = vsub.s32 0, %v660
    %v662 = vrot.slane %v657, %v661
    %664 = vmatprep.subr.mxu0 0.0
    %665 = vmatpush1.msra.mxu0 %v608
    %666 = vmatprep.subr.mxu0 0.0
    %667 = vmatpush1.msra.mxu0 %v607
    %668 = vmatprep.subr.mxu0 0.0
    %669 = vmatpush1.msra.mxu0 %v606
    %670 = vmatprep.subr.mxu0 0.0
    %671 = vmatpush1.msra.mxu0 %v605
    %672 = vmatprep.subr.mxu0 0.0
    %673 = vmatpush1.msra.mxu0 %v604
    %674 = vmatprep.subr.mxu0 0.0
    %675 = vmatpush1.msra.mxu0 %v603
    %676 = vmatprep.subr.mxu0 0.0
    %677 = vmatpush1.msra.mxu0 %v602
    %678 = vmatprep.subr.mxu0 0.0
    %679 = vmatpush1.msra.mxu0 %v601
    %680 = vmatprep.subr.mxu0 0.0
    %681 = vmatpush1.msra.mxu0 %v600
    %682 = vmatprep.subr.mxu0 0.0
    %683 = vmatpush1.msra.mxu0 %v599
    %684 = vmatprep.subr.mxu0 0.0
    %685 = vmatpush1.msra.mxu0 %v598
    %686 = vmatprep.subr.mxu0 0.0
    %687 = vmatpush1.msra.mxu0 %v597
    %688 = vmatprep.subr.mxu0 0.0
    %689 = vmatpush1.msra.mxu0 %v596
    %690 = vmatprep.subr.mxu0 0.0
    %691 = vmatpush1.msra.mxu0 %v595
    %692 = vmatprep.subr.mxu0 0.0
    %693 = vmatpush1.msra.mxu0 %v594
    %694 = vmatprep.subr.mxu0 0.0
    %695 = vmatpush1.msra.mxu0 %v593
    %696 = vmatprep.subr.mxu0 0.0
    %697 = vmatpush2.msra.mxu0 %v624
    %698 = vmatprep.subr.mxu0 0.0
    %699 = vmatpush2.msra.mxu0 %v623
    %700 = vmatprep.subr.mxu0 0.0
    %701 = vmatpush2.msra.mxu0 %v622
    %702 = vmatprep.subr.mxu0 0.0
    %703 = vmatpush2.msra.mxu0 %v621
    %704 = vmatprep.subr.mxu0 0.0
    %705 = vmatpush2.msra.mxu0 %v620
    %706 = vmatprep.subr.mxu0 0.0
    %707 = vmatpush2.msra.mxu0 %v619
    %708 = vmatprep.subr.mxu0 0.0
    %709 = vmatpush2.msra.mxu0 %v618
    %710 = vmatprep.subr.mxu0 0.0
    %711 = vmatpush2.msra.mxu0 %v617
    %712 = vmatprep.subr.mxu0 0.0
    %713 = vmatpush2.msra.mxu0 %v616
    %714 = vmatprep.subr.mxu0 0.0
    %715 = vmatpush2.msra.mxu0 %v615
    %716 = vmatprep.subr.mxu0 0.0
    %717 = vmatpush2.msra.mxu0 %v614
    %718 = vmatprep.subr.mxu0 0.0
    %719 = vmatpush2.msra.mxu0 %v613
    %720 = vmatprep.subr.mxu0 0.0
    %721 = vmatpush2.msra.mxu0 %v612
    %722 = vmatprep.subr.mxu0 0.0
    %723 = vmatpush2.msra.mxu0 %v611
    %724 = vmatprep.subr.mxu0 0.0
    %725 = vmatpush2.msra.mxu0 %v610
    %726 = vmatprep.subr.mxu0 0.0
    %727 = vmatpush2.msra.mxu0 %v609
    %728 = vmatprep.mubr.f32.mxu0 %v562
    %729 = vmatmul.mubr.f32.gmra.mxu0 %v561
    %v730 = vpop.f32.mrf.mxu0
    %v731 = vadd.f32 %v662, %v730
    %v732 = vpop.f32.mrf.mxu0
    %733 = vmatprep.mubr.f32.mxu0 %v566
    %734 = vmatmul.mubr.f32.gmra.mxu0 %v565
    %v735 = vpop.f32.mrf.mxu0
    %v736 = vadd.f32 %v662, %v735
    %v737 = vpop.f32.mrf.mxu0
    %738 = vmatprep.mubr.f32.mxu0 %v570
    %739 = vmatmul.mubr.f32.gmra.mxu0 %v569
    %v740 = vpop.f32.mrf.mxu0
    %v741 = vadd.f32 %v662, %v740
    %v742 = vpop.f32.mrf.mxu0
    %743 = vmatprep.mubr.f32.mxu0 %v574
    %744 = vmatmul.mubr.f32.gmra.mxu0 %v573
    %v745 = vpop.f32.mrf.mxu0
    %v746 = vadd.f32 %v662, %v745
    %v747 = vpop.f32.mrf.mxu0
    %748 = vmatprep.mubr.f32.mxu0 %v578
    %749 = vmatmul.mubr.f32.gmra.mxu0 %v577
    %v750 = vpop.f32.mrf.mxu0
    %v751 = vadd.f32 %v662, %v750
    %v752 = vpop.f32.mrf.mxu0
    %753 = vmatprep.mubr.f32.mxu0 %v582
    %754 = vmatmul.mubr.f32.gmra.mxu0 %v581
    %v755 = vpop.f32.mrf.mxu0
    %v756 = vadd.f32 %v662, %v755
    %v757 = vpop.f32.mrf.mxu0
    %758 = vmatprep.mubr.f32.mxu0 %v586
    %759 = vmatmul.mubr.f32.gmra.mxu0 %v585
    %v760 = vpop.f32.mrf.mxu0
    %v761 = vadd.f32 %v662, %v760
    %v762 = vpop.f32.mrf.mxu0
    %763 = vmatprep.mubr.f32.mxu0 %v590
    %764 = vmatmul.mubr.f32.gmra.mxu0 %v589
    %v765 = vpop.f32.mrf.mxu0
    %v766 = vadd.f32 %v662, %v765
    %v767 = vpop.f32.mrf.mxu0
    %768 = vdwg.mxu0
    %769 = vmatprep.subr.mxu0 0.0
    %770 = vmatpush1.msra.mxu0 %v640
    %771 = vmatprep.subr.mxu0 0.0
    %772 = vmatpush1.msra.mxu0 %v639
    %773 = vmatprep.subr.mxu0 0.0
    %774 = vmatpush1.msra.mxu0 %v638
    %775 = vmatprep.subr.mxu0 0.0
    %776 = vmatpush1.msra.mxu0 %v637
    %777 = vmatprep.subr.mxu0 0.0
    %778 = vmatpush1.msra.mxu0 %v636
    %779 = vmatprep.subr.mxu0 0.0
    %780 = vmatpush1.msra.mxu0 %v635
    %781 = vmatprep.subr.mxu0 0.0
    %782 = vmatpush1.msra.mxu0 %v634
    %783 = vmatprep.subr.mxu0 0.0
    %784 = vmatpush1.msra.mxu0 %v633
    %785 = vmatprep.subr.mxu0 0.0
    %786 = vmatpush1.msra.mxu0 %v632
    %787 = vmatprep.subr.mxu0 0.0
    %788 = vmatpush1.msra.mxu0 %v631
    %789 = vmatprep.subr.mxu0 0.0
    %790 = vmatpush1.msra.mxu0 %v630
    %791 = vmatprep.subr.mxu0 0.0
    %792 = vmatpush1.msra.mxu0 %v629
    %793 = vmatprep.subr.mxu0 0.0
    %794 = vmatpush1.msra.mxu0 %v628
    %795 = vmatprep.subr.mxu0 0.0
    %796 = vmatpush1.msra.mxu0 %v627
    %797 = vmatprep.subr.mxu0 0.0
    %798 = vmatpush1.msra.mxu0 %v626
    %799 = vmatprep.subr.mxu0 0.0
    %800 = vmatpush1.msra.mxu0 %v625
    %801 = vmatprep.subr.mxu0 0.0
    %802 = vmatpush2.msra.mxu0 %v656
    %803 = vmatprep.subr.mxu0 0.0
    %804 = vmatpush2.msra.mxu0 %v655
    %805 = vmatprep.subr.mxu0 0.0
    %806 = vmatpush2.msra.mxu0 %v654
    %807 = vmatprep.subr.mxu0 0.0
    %808 = vmatpush2.msra.mxu0 %v653
    %809 = vmatprep.subr.mxu0 0.0
    %810 = vmatpush2.msra.mxu0 %v652
    %811 = vmatprep.subr.mxu0 0.0
    %812 = vmatpush2.msra.mxu0 %v651
    %813 = vmatprep.subr.mxu0 0.0
    %814 = vmatpush2.msra.mxu0 %v650
    %815 = vmatprep.subr.mxu0 0.0
    %816 = vmatpush2.msra.mxu0 %v649
    %817 = vmatprep.subr.mxu0 0.0
    %818 = vmatpush2.msra.mxu0 %v648
    %819 = vmatprep.subr.mxu0 0.0
    %820 = vmatpush2.msra.mxu0 %v647
    %821 = vmatprep.subr.mxu0 0.0
    %822 = vmatpush2.msra.mxu0 %v646
    %823 = vmatprep.subr.mxu0 0.0
    %824 = vmatpush2.msra.mxu0 %v645
    %825 = vmatprep.subr.mxu0 0.0
    %826 = vmatpush2.msra.mxu0 %v644
    %827 = vmatprep.subr.mxu0 0.0
    %828 = vmatpush2.msra.mxu0 %v643
    %829 = vmatprep.subr.mxu0 0.0
    %830 = vmatpush2.msra.mxu0 %v642
    %831 = vmatprep.subr.mxu0 0.0
    %832 = vmatpush2.msra.mxu0 %v641
    %833 = vmatprep.mubr.f32.mxu0 %v564
    %834 = vmatmul.mubr.f32.gmra.mxu0 %v563
    %v835 = vpop.f32.mrf.mxu0
    %v836 = vadd.f32 %v731, %v835
    %v837 = vpop.f32.mrf.mxu0
    %838 = vmatprep.mubr.f32.mxu0 %v568
    %839 = vmatmul.mubr.f32.gmra.mxu0 %v567
    %v840 = vpop.f32.mrf.mxu0
    %v841 = vadd.f32 %v736, %v840
    %v842 = vpop.f32.mrf.mxu0
    %843 = vmatprep.mubr.f32.mxu0 %v572
    %844 = vmatmul.mubr.f32.gmra.mxu0 %v571
    %v845 = vpop.f32.mrf.mxu0
    %v846 = vadd.f32 %v741, %v845
    %v847 = vpop.f32.mrf.mxu0
    %848 = vmatprep.mubr.f32.mxu0 %v576
    %849 = vmatmul.mubr.f32.gmra.mxu0 %v575
    %v850 = vpop.f32.mrf.mxu0
    %v851 = vadd.f32 %v746, %v850
    %v852 = vpop.f32.mrf.mxu0
    %853 = vmatprep.mubr.f32.mxu0 %v580
    %854 = vmatmul.mubr.f32.gmra.mxu0 %v579
    %v855 = vpop.f32.mrf.mxu0
    %v856 = vadd.f32 %v751, %v855
    %v857 = vpop.f32.mrf.mxu0
    %858 = vmatprep.mubr.f32.mxu0 %v584
    %859 = vmatmul.mubr.f32.gmra.mxu0 %v583
    %v860 = vpop.f32.mrf.mxu0
    %v861 = vadd.f32 %v756, %v860
    %v862 = vpop.f32.mrf.mxu0
    %863 = vmatprep.mubr.f32.mxu0 %v588
    %864 = vmatmul.mubr.f32.gmra.mxu0 %v587
    %v865 = vpop.f32.mrf.mxu0
    %v866 = vadd.f32 %v761, %v865
    %v867 = vpop.f32.mrf.mxu0
    %868 = vmatprep.mubr.f32.mxu0 %v592
    %869 = vmatmul.mubr.f32.gmra.mxu0 %v591
    %v870 = vpop.f32.mrf.mxu0
    %v871 = vadd.f32 %v766, %v870
    %v872 = vpop.f32.mrf.mxu0
    %873 = vdwg.mxu0
    %874 = vst [vmem:[%s5] sm:$0xff] %v836
    %875 = vst [vmem:[%s5 + $0x8] sm:$0xff] %v841
    %876 = vst [vmem:[%s5 + $0x10] sm:$0xff] %v846
    %877 = vst [vmem:[%s5 + $0x18] sm:$0xff] %v851
    %878 = vst [vmem:[%s5 + $0x20] sm:$0xff] %v856
    %879 = vst [vmem:[%s5 + $0x28] sm:$0xff] %v861
    %880 = vst [vmem:[%s5 + $0x30] sm:$0xff] %v866
    %881 = vst [vmem:[%s5 + $0x38] sm:$0xff] %v871
    // Predicated region
    $region38: #{nnh1_sigm_forward.1} parent=1 // pred_check
      _
    $region39: #{nnh1_sigm_forward.1} parent=1 // pred_check_branch
      %883 = sbr.rel (0) target = $region41
    $region40: #{nnh1_sigm_forward.1} parent=1 // pred_region
      _
    $region41: #{nnh1_sigm_forward.1} parent=1 // pred_fallthru
      _
    // Predicated region
    $region42: #{nnh1_sigm_forward.1} parent=1 // pred_check
      _
    $region43: #{nnh1_sigm_forward.1} parent=1 // pred_check_branch
      %885 = sbr.rel (0) target = $region45
    $region44: #{nnh1_sigm_forward.1} parent=1 // pred_region
      _
    $region45: #{nnh1_sigm_forward.1} parent=1 // pred_fallthru
      _
    %886 = vsyncpa [#allocation3], 1
    %887 = vsyncpa [#allocation5], 1
    %888 = vsyncpa [#allocation8], 1

</llo_original>
